<compile_context>
chip_gen: v6e
topology: v6e:2x2x1
jax: 0.10.0
libtpu: 0.0.40
codegen_flags: <defaults>
</compile_context>

<pallas_src>
import jax
import jax.numpy as jnp
from jax.experimental import pallas as pl
from jax.experimental.pallas import tpu as pltpu


IN_F = 2             # nn.Linear(2, 4)
OUT_F = 4
CAT_F = 3 * OUT_F    # torch.cat((y, y, y), dim=1)

MAX_TB = 32768       # batch-tile cap (lane axis); 6.3 MiB double-buffered VMEM


def _linear_relu_cat_kernel(x_ref, wb_ref, o_ref):
    # x_ref : (2, TB)  f32 VMEM  -- feature-major x, batch on the lane axis
    # wb_ref: (12, 3)  f32 VMEM  -- [W[:,0] | W[:,1] | b], each tiled 3x on rows
    # o_ref : (12, TB) f32 VMEM  -- feature-major cat(y, y, y)
    w0 = wb_ref[:, 0:1]            # (12, 1)
    w1 = wb_ref[:, 1:2]            # (12, 1)
    b = wb_ref[:, 2:3]             # (12, 1)

    x0 = x_ref[0:1, :]             # (1, TB)
    x1 = x_ref[1:2, :]             # (1, TB)

    # Linear (+ 3x row replication baked into wb) as two broadcast VPU FMAs.
    acc = w0 * x0 + w1 * x1 + b    # (12, TB)

    # ReLU + single full-width (lane-dense) store.
    o_ref[...] = jnp.maximum(acc, 0).astype(o_ref.dtype)


def linear_relu_cat(x, weight, bias, *, tb=None):
    """x: (B, 2), weight: (4, 2), bias: (4,) -> (B, 12)."""
    B, in_f = x.shape
    out_f = weight.shape[0]
    cat_f = 3 * out_f

    # Feature-major (lane-dense) input layout: batch -> lanes.
    x_t = x.T                                                    # (2, B)

    # Tiny constant table: columns are [W[:,0], W[:,1], b], rows tiled 3x so
    # the kernel emits the concatenated (12, TB) output directly.
    w_cols = jnp.concatenate([weight, bias[:, None]], axis=1)    # (4, 3)
    wb = jnp.tile(w_cols, (3, 1)).astype(x.dtype)                # (12, 3)

    # Batch tile: whole batch if it fits, else 32768 lanes (multiple of 128).
    if tb is None:
        tb = B if B <= MAX_TB else MAX_TB
    grid = (pl.cdiv(B, tb),)

    out_t = pl.pallas_call(
        _linear_relu_cat_kernel,
        out_shape=jax.ShapeDtypeStruct((cat_f, B), x.dtype),
        grid_spec=pltpu.PrefetchScalarGridSpec(
            num_scalar_prefetch=0,
            grid=grid,
            in_specs=[
                pl.BlockSpec((in_f, tb), lambda i: (0, i)),      # x_t tile
                pl.BlockSpec((cat_f, 3), lambda i: (0, 0)),      # wb (fetched once)
            ],
            out_specs=pl.BlockSpec((cat_f, tb), lambda i: (0, i)),
        ),
        compiler_params=pltpu.CompilerParams(
            dimension_semantics=("parallel",),
        ),
    )(x_t, wb)

    # Back to the PyTorch layout (B, 12). Consumers that accept feature-major
    # output can use out_t directly and skip this transpose.
    return out_t.T


def _reference(x, weight, bias):
    y = jnp.maximum(x @ weight.T + bias[None, :], 0.0)
    return jnp.concatenate([y, y, y], axis=1)


if __name__ == "__main__":
    key = jax.random.PRNGKey(0)
    kx, kw, kb, kx2 = jax.random.split(key, 4)

    # Deterministic PyTorch-style init: uniform(-1/sqrt(fan_in), 1/sqrt(fan_in))
    bound = 1.0 / jnp.sqrt(jnp.float32(IN_F))
    weight = jax.random.uniform(kw, (OUT_F, IN_F), jnp.float32, -bound, bound)
    bias = jax.random.uniform(kb, (OUT_F,), jnp.float32, -bound, bound)

    # Small primary check (single block, tb == B).
    B = 8
    x = jax.random.normal(kx, (B, IN_F), jnp.float32)
    out = jax.block_until_ready(linear_relu_cat(x, weight, bias))
    ref = _reference(x, weight, bias)
    assert out.shape == (B, CAT_F)
    assert jnp.allclose(out, ref, atol=1e-5, rtol=1e-5)

    # Secondary check: multi-step grid with a partial last tile (masked stores).
    B2 = 200
    x2 = jax.random.normal(kx2, (B2, IN_F), jnp.float32)
    out2 = jax.block_until_ready(linear_relu_cat(x2, weight, bias, tb=128))
    ref2 = _reference(x2, weight, bias)
    assert out2.shape == (B2, CAT_F)
    assert jnp.allclose(out2, ref2, atol=1e-5, rtol=1e-5)

    print("KERNEL_OK")
</pallas_src>

<mosaic_0001>
module attributes {stable_mosaic.version = 11 : i64} {
  func.func @_linear_relu_cat_kernel(%arg0: i32, %arg1: memref<2x8xf32, #tpu.memory_space<vmem>>, %arg2: memref<12x3xf32, #tpu.memory_space<vmem>>, %arg3: memref<12x8xf32, #tpu.memory_space<vmem>>) attributes {dimension_semantics = [#tpu.dimension_semantics<parallel>], iteration_bounds = array<i64: 1>, scalar_prefetch = 0 : i64, scratch_operands = 0 : i64, tpu.core_type = #tpu.core_type<tc>, window_params = [{transform_indices = @transform_0, window_bounds = array<i64: 2, 8>}, {pipeline_mode = #tpu.pipeline_mode<synchronous>, transform_indices = @transform_1, window_bounds = array<i64: 12, 3>}, {transform_indices = @transform_2, window_bounds = array<i64: 12, 8>}]} {
    %c0 = arith.constant 0 : index
    %c0_0 = arith.constant 0 : index
    %0 = vector.load %arg2[%c0, %c0_0] : memref<12x3xf32, #tpu.memory_space<vmem>>, vector<12x1xf32>
    %c0_1 = arith.constant 0 : index
    %c1 = arith.constant 1 : index
    %1 = vector.load %arg2[%c0_1, %c1] : memref<12x3xf32, #tpu.memory_space<vmem>>, vector<12x1xf32>
    %c0_2 = arith.constant 0 : index
    %c2 = arith.constant 2 : index
    %2 = vector.load %arg2[%c0_2, %c2] : memref<12x3xf32, #tpu.memory_space<vmem>>, vector<12x1xf32>
    %c0_3 = arith.constant 0 : index
    %c0_4 = arith.constant 0 : index
    %3 = vector.load %arg1[%c0_3, %c0_4] : memref<2x8xf32, #tpu.memory_space<vmem>>, vector<1x8xf32>
    %c1_5 = arith.constant 1 : index
    %c0_6 = arith.constant 0 : index
    %4 = vector.load %arg1[%c1_5, %c0_6] : memref<2x8xf32, #tpu.memory_space<vmem>>, vector<1x8xf32>
    %5 = vector.broadcast %0 : vector<12x1xf32> to vector<12x8xf32>
    %6 = vector.broadcast %3 : vector<1x8xf32> to vector<12x8xf32>
    %7 = arith.mulf %5, %6 : vector<12x8xf32>
    %8 = vector.broadcast %1 : vector<12x1xf32> to vector<12x8xf32>
    %9 = vector.broadcast %4 : vector<1x8xf32> to vector<12x8xf32>
    %10 = arith.mulf %8, %9 : vector<12x8xf32>
    %11 = arith.addf %7, %10 : vector<12x8xf32>
    %12 = vector.broadcast %2 : vector<12x1xf32> to vector<12x8xf32>
    %13 = arith.addf %11, %12 : vector<12x8xf32>
    %cst = arith.constant 0.000000e+00 : f32
    %14 = vector.broadcast %cst : f32 to vector<12x8xf32>
    %15 = arith.maximumf %13, %14 : vector<12x8xf32>
    %c0_7 = arith.constant 0 : index
    %c0_8 = arith.constant 0 : index
    %16 = vector.load %arg3[%c0_7, %c0_8] : memref<12x8xf32, #tpu.memory_space<vmem>>, vector<12x8xf32>
    tpu.vector_store %arg3[%c0_7, %c0_8], %15 {strides = array<i32>} : memref<12x8xf32, #tpu.memory_space<vmem>>, vector<12x8xf32>,
    return
  }
  func.func @transform_0(%arg0: i32) -> (i32, i32) {
    %c0_i32 = arith.constant 0 : i32
    %c0_i32_0 = arith.constant 0 : i32
    return %c0_i32, %arg0 : i32, i32
  }
  func.func @transform_1(%arg0: i32) -> (i32, i32) {
    %c0_i32 = arith.constant 0 : i32
    %c0_i32_0 = arith.constant 0 : i32
    %c0_i32_1 = arith.constant 0 : i32
    return %c0_i32, %c0_i32_0 : i32, i32
  }
  func.func @transform_2(%arg0: i32) -> (i32, i32) {
    %c0_i32 = arith.constant 0 : i32
    %c0_i32_0 = arith.constant 0 : i32
    return %c0_i32, %arg0 : i32, i32
  }
}

</mosaic_0001>

<llo_original>
// kernel: tpu_custom_call.1
$region0: #{tpu_custom_call.1}
  #allocation0 [shape = 'u32[]', space=smem, size = 0x4, offset = 0x4, fixed_abs, tag = 'smem constant byte address 0x4 - core index']
  #allocation1 [shape = 'u32[144,128]{1,0:T(1,128)}', space=vmem, size = 0x12000, scoped, tag = 'internal scratch']
  %s0 = inlined_call_operand.vmem [shape: f32[2,8], index: 0, kind: input, shape index: {}]
  %s1 = inlined_call_operand.vmem [shape: f32[12,3], index: 1, kind: input, shape index: {}]
  %s2 = inlined_call_operand.vmem [shape: f32[12,8], index: 2, kind: output, shape index: {}]
  %s3 = sld [smem:[#allocation0]]
  $region18: #{tpu_custom_call.1} parent=0
    _
  %s5 = ssub.s32 1, %s3
  %s6 = scalar_select 0, %s5, %s3
  // Predicated region
  $region2: #{tpu_custom_call.1} parent=0 // pred_check
    _
  $region3: #{tpu_custom_call.1} parent=0 // pred_check_branch
    %8 = sbr.rel (0) target = $region5
  $region4: #{tpu_custom_call.1} parent=0 // pred_region
    _
  $region5: #{tpu_custom_call.1} parent=0 // pred_fallthru
    _
  // Predicated region
  $region6: #{tpu_custom_call.1} parent=0 // pred_check
    _
  $region7: #{tpu_custom_call.1} parent=0 // pred_check_branch
    %10 = sbr.rel (0) target = $region9
  $region8: #{tpu_custom_call.1} parent=0 // pred_region
    _
  $region9: #{tpu_custom_call.1} parent=0 // pred_fallthru
    _
  %v11 = vld [vmem:[%s1] sm:$0xff]
  %v12 = vld [vmem:[%s1 + $0x8] sm:$0xf]
  %v13 = vld [vmem:[%s0] sm:$0x1]
  %v14 = vld [vmem:[%s0 + $0x1] sm:$0x1]
  %16 = vset.pattern.permute.xlu0 0
  %17 = vperm.xlu0 %16, %v11
  %v18 = vpop.permute.xlu0 %17
  %21 = vset.pattern.permute.xlu0 0
  %22 = vperm.xlu0 %21, %v12
  %v23 = vpop.permute.xlu0 %22
  %v25 = vlaneseq
  %v26 = vshrl.u32 %v25, 7
  %v27 = vsub.s32 0, %v26
  %v28 = vrot.slane %v13, %v27
  %v29 = vmul.f32 %v18, %v28
  %v30 = vmul.f32 %v23, %v28
  %31 = vset.pattern.permute.xlu0 1
  %32 = vperm.xlu0 %31, %v11
  %v33 = vpop.permute.xlu0 %32
  %35 = vset.pattern.permute.xlu0 1
  %36 = vperm.xlu0 %35, %v12
  %v37 = vpop.permute.xlu0 %36
  %v39 = vlaneseq
  %v40 = vshrl.u32 %v39, 7
  %v41 = vsub.s32 0, %v40
  %v42 = vrot.slane %v14, %v41
  %v43 = vmul.f32 %v33, %v42
  %v44 = vmul.f32 %v37, %v42
  %v45 = vadd.f32 %v29, %v43
  %v46 = vadd.f32 %v30, %v44
  %47 = vset.pattern.permute.xlu0 2
  %48 = vperm.xlu0 %47, %v11
  %v49 = vpop.permute.xlu0 %48
  %51 = vset.pattern.permute.xlu0 2
  %52 = vperm.xlu0 %51, %v12
  %v53 = vpop.permute.xlu0 %52
  %v55 = vadd.f32 %v45, %v49
  %v56 = vadd.f32 %v46, %v53
  %v57 = vmax.f32 %v55, 0.0
  %v58 = vmax.f32 %v56, 0.0
  %vm59 = vcmask 64512
  %60 = vst.msk [vmem:[%s2] sm:$0xff] %vm59, %v57
  %vm61 = vcmask 60416
  %62 = vst.msk [vmem:[%s2 + $0x8] sm:$0xf] %vm61, %v58
  // Predicated region
  $region10: #{tpu_custom_call.1} parent=0 // pred_check
    _
  $region11: #{tpu_custom_call.1} parent=0 // pred_check_branch
    %64 = sbr.rel (0) target = $region13
  $region12: #{tpu_custom_call.1} parent=0 // pred_region
    _
  $region13: #{tpu_custom_call.1} parent=0 // pred_fallthru
    _
  // Predicated region
  $region14: #{tpu_custom_call.1} parent=0 // pred_check
    _
  $region15: #{tpu_custom_call.1} parent=0 // pred_check_branch
    %66 = sbr.rel (0) target = $region17
  $region16: #{tpu_custom_call.1} parent=0 // pred_region
    _
  $region17: #{tpu_custom_call.1} parent=0 // pred_fallthru
    _

</llo_original>
